<compile_context>
chip_gen: v6e
topology: v6e:2x2x1
jax: 0.10.0
libtpu: 0.0.40
codegen_flags: <defaults>
</compile_context>

<pallas_src>
import jax
import jax.numpy as jnp
from jax.experimental import pallas as pl
from jax.experimental.pallas import tpu as pltpu

_LANES = 128
_VMEM_LIMIT_BYTES = 48 * 1024 * 1024   # headroom under v7x's 64 MiB physical VMEM
_MIN_BLOCK_BYTES = 512 * 1024          # stay on the ~85% HBM-roofline plateau
_BIG_TENSOR_BYTES = 8 * 1024 * 1024    # threshold for the ">= 8 grid steps" rule


def _hsigmoid_kernel(x_ref, o_ref):
    # relu6(x + 3) / 6  ==  clip(x + 3, 0, 6) * (1/6); compute in f32 regardless
    # of the input dtype (VPU slack makes this free) and cast back on the store.
    x = x_ref[...].astype(jnp.float32)
    o_ref[...] = (jnp.clip(x + 3.0, 0.0, 6.0) * (1.0 / 6.0)).astype(o_ref.dtype)


def _sublane_quantum(dtype) -> int:
    """Minimum sublane tile per dtype: 8 for 4-byte, 16 for 2-byte, 32 for 1-byte."""
    itemsize = jnp.dtype(dtype).itemsize
    return {4: 8, 2: 16, 1: 32}.get(itemsize, 8)


def _target_block_bytes() -> int:
    # v7x HBM (~3.2 TB/s) drains a 4 MiB step so fast that the fixed ~0.35 us
    # per-grid-step overhead is ~10%; 8 MiB blocks halve that. v5e/v6e stay at
    # 4 MiB (overhead already <5% there). 8 MiB * (in+out) * 2 buffers = 32 MiB
    # VMEM, safely under the 48 MiB limit and 64 MiB physical.
    try:
        kind = jax.devices()[0].device_kind.lower()
    except Exception:
        return 4 * 1024 * 1024
    if "v7" in kind or "7x" in kind:
        return 8 * 1024 * 1024
    return 4 * 1024 * 1024


def _choose_tile_rows(rows: int, itemsize: int, sublane: int) -> int:
    """Rows (of 128 lanes) per block: big aligned blocks, >= 8 even steps when big."""
    row_bytes = _LANES * itemsize
    target = _target_block_bytes()

    tile_rows = max(sublane, (target // row_bytes) // sublane * sublane)
    min_rows = max(sublane, (_MIN_BLOCK_BYTES // row_bytes) // sublane * sublane)

    total_bytes = rows * row_bytes
    if total_bytes >= _BIG_TENSOR_BYTES:
        # >= 8 grid steps (>= 4 per v7x TensorCore) keeps both TCs' DMA
        # pipelines full; blocks never shrink below the roofline plateau.
        cap = pl.cdiv(pl.cdiv(rows, 8), sublane) * sublane
        tile_rows = min(tile_rows, max(cap, min_rows))
    elif rows >= 2 * sublane:
        # Small tensors: at least 2 steps so both v7x TCs get some work.
        half = pl.cdiv(pl.cdiv(rows, 2), sublane) * sublane
        tile_rows = min(tile_rows, half)

    tile_rows = max(sublane, min(tile_rows, pl.cdiv(rows, sublane) * sublane))

    # Prefer an even grid-step count: an odd count leaves one v7x TC a full
    # block behind. Only accept the nudge if it actually lands on an even
    # count and keeps blocks above the plateau size.
    steps = pl.cdiv(rows, tile_rows)
    if steps > 1 and steps % 2 == 1:
        nudged = pl.cdiv(pl.cdiv(rows, steps + 1), sublane) * sublane
        big_enough = (nudged >= sublane and
                      nudged * row_bytes >= min(_MIN_BLOCK_BYTES, tile_rows * row_bytes))
        if big_enough and pl.cdiv(rows, nudged) % 2 == 0:
            tile_rows = nudged
    return tile_rows


def _compiler_params():
    return pltpu.CompilerParams(
        dimension_semantics=("parallel",),
        vmem_limit_bytes=_VMEM_LIMIT_BYTES,
    )


def _cost(n_elems: int, itemsize: int) -> pl.CostEstimate:
    # Pure HBM streaming: read n + write n elements, ~4 VALU ops per element.
    return pl.CostEstimate(flops=4 * n_elems, transcendentals=0,
                           bytes_accessed=2 * n_elems * itemsize)


def _run_2d(x2d: jax.Array, tile_rows: int) -> jax.Array:
    rows, lanes = x2d.shape
    itemsize = jnp.dtype(x2d.dtype).itemsize
    return pl.pallas_call(
        _hsigmoid_kernel,
        out_shape=jax.ShapeDtypeStruct((rows, lanes), x2d.dtype),
        grid_spec=pl.GridSpec(
            grid=(pl.cdiv(rows, tile_rows),),
            in_specs=[pl.BlockSpec((tile_rows, lanes), lambda i: (i, 0))],
            out_specs=pl.BlockSpec((tile_rows, lanes), lambda i: (i, 0)),
        ),
        compiler_params=_compiler_params(),
        cost_estimate=_cost(rows * lanes, itemsize),
    )(x2d)


def _run_1d(flat: jax.Array, block_elems: int) -> jax.Array:
    (n,) = flat.shape
    itemsize = jnp.dtype(flat.dtype).itemsize
    return pl.pallas_call(
        _hsigmoid_kernel,
        out_shape=jax.ShapeDtypeStruct((n,), flat.dtype),
        grid_spec=pl.GridSpec(
            grid=(pl.cdiv(n, block_elems),),
            in_specs=[pl.BlockSpec((block_elems,), lambda i: (i,))],
            out_specs=pl.BlockSpec((block_elems,), lambda i: (i,))),
        compiler_params=_compiler_params(),
        cost_estimate=_cost(n, itemsize),
    )(flat)


def hsigmoid(x: jax.Array) -> jax.Array:
    """Hard-sigmoid matching PyTorch F.relu6(x + 3.0) / 6.0 (any shape)."""
    orig_shape = x.shape
    if not jnp.issubdtype(x.dtype, jnp.floating):
        # PyTorch promotes integer inputs to float via `x + 3.0`; mirror that.
        x = x.astype(jnp.float32)
    dtype = x.dtype
    itemsize = jnp.dtype(dtype).itemsize
    sublane = _sublane_quantum(dtype)
    n = int(x.size)
    if n == 0:
        return x.reshape(orig_shape)

    if n % _LANES == 0:
        # Fast path: free re-view as a lane-dense (rows, 128) slab -> exactly
        # one HBM read + one HBM write, unmasked full-width stores.
        rows = n // _LANES
        tile_rows = _choose_tile_rows(rows, itemsize, sublane)
        out = _run_2d(x.reshape(rows, _LANES), tile_rows)
    else:
        # Ragged path: kernel on the flat 1-D view with 128-aligned blocks;
        # Pallas masks the ragged final block. No pad / slice HBM passes.
        rows = pl.cdiv(n, _LANES)
        tile_rows = _choose_tile_rows(rows, itemsize, sublane)
        out = _run_1d(x.reshape(-1), tile_rows * _LANES)

    return out.reshape(orig_shape)


def hsigmoid_ref(x: jax.Array) -> jax.Array:
    return jnp.clip(x + 3.0, 0.0, 6.0) / 6.0


if __name__ == "__main__":
    # TODO(synk): PyTorch's `inplace=True` has no functional-JAX equivalent;
    # input_output_aliases could emulate it but is intentionally omitted so the
    # caller's input buffer is never clobbered.
    # NOTE: in a real model, prefer fusing this op into adjacent kernels (jnp
    # reference, or the epilogue of a matmul/conv kernel) -- a standalone
    # elementwise pallas_call is irreducibly one extra HBM read+write pass.

    key = jax.random.PRNGKey(0)
    k1, k2, k3 = jax.random.split(key, 3)

    # NCHW activation tensor (aligned fast path: no padding / slicing).
    x = jax.random.normal(key, (2, 4, 16, 16), dtype=jnp.float32) * 4.0
    y = jax.block_until_ready(hsigmoid(x))
    assert y.shape == x.shape and y.dtype == x.dtype
    assert jnp.allclose(y, hsigmoid_ref(x), atol=1e-6, rtol=1e-6)

    # Ragged shape (flat 1-D masked path; numel % 128 != 0, no pad/slice).
    x_r = jax.random.normal(k1, (2, 3, 7, 5), dtype=jnp.float32) * 4.0
    y_r = jax.block_until_ready(hsigmoid(x_r))
    assert y_r.shape == x_r.shape
    assert jnp.allclose(y_r, hsigmoid_ref(x_r), atol=1e-6, rtol=1e-6)

    # bf16 (sublane quantum = 16; in-kernel f32 compute keeps 1/6 accurate).
    x_b = (jax.random.normal(k2, (2, 4, 16, 16)) * 4.0).astype(jnp.bfloat16)
    y_b = jax.block_until_ready(hsigmoid(x_b))
    assert y_b.shape == x_b.shape and y_b.dtype == jnp.bfloat16
    assert jnp.allclose(
        y_b.astype(jnp.float32),
        hsigmoid_ref(x_b.astype(jnp.float32)),
        atol=2e-2, rtol=2e-2,
    )

    # Tiny aligned input: a single (1, 128) row under an (8, 128) block
    # (exercises Pallas masking a block larger than the array).
    x_t = jax.random.normal(k3, (2, 64), dtype=jnp.float32) * 4.0
    y_t = jax.block_until_ready(hsigmoid(x_t))
    assert y_t.shape == x_t.shape
    assert jnp.allclose(y_t, hsigmoid_ref(x_t), atol=1e-6, rtol=1e-6)

    print("KERNEL_OK")
</pallas_src>

<mosaic_0001>
module attributes {stable_mosaic.version = 11 : i64} {
  func.func @_hsigmoid_kernel(%arg0: i32, %arg1: memref<8x128xf32, #tpu.memory_space<vmem>>, %arg2: memref<8x128xf32, #tpu.memory_space<vmem>>) attributes {dimension_semantics = [#tpu.dimension_semantics<parallel>], iteration_bounds = array<i64: 2>, scalar_prefetch = 0 : i64, scratch_operands = 0 : i64, tpu.core_type = #tpu.core_type<tc>, window_params = [{transform_indices = @transform_0, window_bounds = array<i64: 8, 128>}, {transform_indices = @transform_1, window_bounds = array<i64: 8, 128>}]} {
    %c0 = arith.constant 0 : index
    %c0_0 = arith.constant 0 : index
    %0 = vector.load %arg1[%c0, %c0_0] : memref<8x128xf32, #tpu.memory_space<vmem>>, vector<8x128xf32>
    %cst = arith.constant 3.000000e+00 : f32
    %1 = vector.broadcast %cst : f32 to vector<8x128xf32>
    %2 = arith.addf %0, %1 : vector<8x128xf32>
    %cst_1 = arith.constant 0.000000e+00 : f32
    %cst_2 = arith.constant 6.000000e+00 : f32
    %3 = vector.broadcast %cst_1 : f32 to vector<8x128xf32>
    %4 = arith.maximumf %3, %2 : vector<8x128xf32>
    %5 = vector.broadcast %cst_2 : f32 to vector<8x128xf32>
    %6 = arith.minimumf %5, %4 : vector<8x128xf32>
    %cst_3 = arith.constant 0.166666672 : f32
    %7 = vector.broadcast %cst_3 : f32 to vector<8x128xf32>
    %8 = arith.mulf %6, %7 : vector<8x128xf32>
    %c0_4 = arith.constant 0 : index
    %c0_5 = arith.constant 0 : index
    %9 = vector.load %arg2[%c0_4, %c0_5] : memref<8x128xf32, #tpu.memory_space<vmem>>, vector<8x128xf32>
    tpu.vector_store %arg2[%c0_4, %c0_5], %8 {strides = array<i32>} : memref<8x128xf32, #tpu.memory_space<vmem>>, vector<8x128xf32>,
    return
  }
  func.func @transform_0(%arg0: i32) -> (i32, i32) {
    %c0_i32 = arith.constant 0 : i32
    %c0_i32_0 = arith.constant 0 : i32
    return %arg0, %c0_i32 : i32, i32
  }
  func.func @transform_1(%arg0: i32) -> (i32, i32) {
    %c0_i32 = arith.constant 0 : i32
    %c0_i32_0 = arith.constant 0 : i32
    return %arg0, %c0_i32 : i32, i32
  }
}

</mosaic_0001>

<llo_original>
// kernel: tpu_custom_call.1
$region0: #{tpu_custom_call.1}
  #allocation0 [shape = 'u32[]', space=smem, size = 0x4, offset = 0x4, fixed_abs, tag = 'smem constant byte address 0x4 - core index']
  #allocation1 [shape = 'u32[144,128]{1,0:T(1,128)}', space=vmem, size = 0x12000, scoped, tag = 'internal scratch']
  %s0 = inlined_call_operand.hbm [shape: f32[16,128], index: 0, kind: input, shape index: {}]
  %s1 = inlined_call_operand.hbm [shape: f32[16,128], index: 1, kind: output, shape index: {}]
  %s2 = sld [smem:[#allocation0]]
  $region41: #{tpu_custom_call.1} parent=0
    _
  %s4 = ssub.s32 1, %s2
  %s5 = scalar_select 0, %s4, %s2
  $region1: #{tpu_custom_call.1} parent=0
    #allocation2 [shape = 'u8[8192]{0}', space=vmem, size = 0x2000, scoped, tag = 'input window, operand 0']
    #allocation3 [shape = 's32[2]{0}', space=sflag, size = 0x8, scoped, tag = 'scoped memory for tpu_custom_call.1']
    #allocation4 [shape = 's32[2]{0}', space=sflag, size = 0x8, scoped, tag = 'scoped memory for tpu_custom_call.1']
    #allocation5 [shape = 'u8[8192]{0}', space=vmem, size = 0x2000, scoped, tag = 'output window, operand 0']
    %6 = vsyncpa [#allocation3], 0
    %s7 = scalar_lea.sflag [#allocation3], 1
    %8 = vsyncpa %s7, 0
    %9 = vsyncpa [#allocation4], 0
    %s10 = scalar_lea.sflag [#allocation4], 1
    %11 = vsyncpa %s10, 0
    loop: start=0, step=1, limit=4
    $region2: #{tpu_custom_call.1} parent=1 // loop_pre_header
      _
    $region3: #{tpu_custom_call.1} parent=1 // loop_header
      %s13 = sphi 0, %s17
      %p14 = scmp.ge.s32.totalorder %s13, 4
      %s23 = sphi 0, %s25
      %s26 = sphi 0, %s23
      %s27 = sphi 0, %s26
      %s43 = sphi 0, %s27
      %s49 = sphi 0, %s51
      %s52 = sphi 0, %s49
      %s53 = sphi 0, %s52
      %s69 = sphi 0, %s53
    $region4: #{tpu_custom_call.1} parent=1 // loop_header_branch
      %16 = sbr.rel (%p14) target = $region8
    $region5: #{tpu_custom_call.1} parent=1 // loop_body
      %s18 = ssub.s32 %s13, 1
      %s19 = ssub.s32 %s13, 2
      %s20 = sadd.s32 %s13, 1
      %s21 = ssub.s32 %s13, %s20
      %p22 = scmp.eq.s32.totalorder %s21, 0
      %s24 = sadd.s32 %s23, 1
      %s25 = scalar_select %p22, %s23, %s24
      %p28 = pneg %p22
      %p29 = scmp.eq.s32.totalorder %s13, 1
      %p30 = por %p28, %p29
      %p31 = scmp.ne.s32.totalorder %s23, %s26
      %p32 = scmp.eq.s32.totalorder %s13, 0
      %p33 = por %p31, %p32
      %p34 = scmp.ne.s32.totalorder %s23, %s26
      %p35 = scmp.eq.s32.totalorder %s18, 1
      %p36 = por %p34, %p35
      %p37 = scmp.ne.s32.totalorder %s26, %s27
      %p38 = scmp.eq.s32.totalorder %s18, 0
      %p39 = por %p37, %p38
      %p40 = scmp.ne.s32.totalorder %s26, %s27
      %p41 = scmp.eq.s32.totalorder %s19, 1
      %p42 = por %p40, %p41
      %p44 = scmp.ne.s32.totalorder %s27, %s43
      %p45 = scmp.eq.s32.totalorder %s19, 0
      %p46 = por %p44, %p45
      %s47 = ssub.s32 %s13, %s20
      %p48 = scmp.eq.s32.totalorder %s47, 0
      %s50 = sadd.s32 %s49, 1
      %s51 = scalar_select %p48, %s49, %s50
      %p54 = pneg %p48
      %p55 = scmp.eq.s32.totalorder %s13, 1
      %p56 = por %p54, %p55
      %p57 = scmp.ne.s32.totalorder %s49, %s52
      %p58 = scmp.eq.s32.totalorder %s13, 0
      %p59 = por %p57, %p58
      %p60 = scmp.ne.s32.totalorder %s49, %s52
      %p61 = scmp.eq.s32.totalorder %s18, 1
      %p62 = por %p60, %p61
      %p63 = scmp.ne.s32.totalorder %s52, %s53
      %p64 = scmp.eq.s32.totalorder %s18, 0
      %p65 = por %p63, %p64
      %p66 = scmp.ne.s32.totalorder %s52, %s53
      %p67 = scmp.eq.s32.totalorder %s19, 1
      %p68 = por %p66, %p67
      %p70 = scmp.ne.s32.totalorder %s53, %s69
      %p71 = scmp.eq.s32.totalorder %s19, 0
      %p72 = por %p70, %p71
      %p73 = scmp.le.s32.totalorder 1, %s13
      %p74 = scmp.lt.s32.totalorder %s13, 3
      %p75 = pnand %p73, %p74
      %p76 = pneg %p75
      // Predicated region
      $region9: #{tpu_custom_call.1} parent=5 // pred_check
        _
      $region10: #{tpu_custom_call.1} parent=5 // pred_check_branch
        %78 = sbr.rel (%p75) target = $region12
      $region11: #{tpu_custom_call.1} parent=5 // pred_region
        %s79 = ssub.s32 %s13, 1
      $region12: #{tpu_custom_call.1} parent=5 // pred_fallthru
        _
      %p80 = scmp.lt.s32.totalorder %s13, 2
      // Predicated region
      $region13: #{tpu_custom_call.1} parent=5 // pred_check
        %p81 = pneg %p80
      $region14: #{tpu_custom_call.1} parent=5 // pred_check_branch
        %83 = sbr.rel (%p81) target = $region16
      $region15: #{tpu_custom_call.1} parent=5 // pred_region
        // Predicated region
        $region17: #{tpu_custom_call.1} parent=15 // pred_check
          %p84 = pneg %p33
        $region18: #{tpu_custom_call.1} parent=15 // pred_check_branch
          %86 = sbr.rel (%p84) target = $region20
        $region19: #{tpu_custom_call.1} parent=15 // pred_region
          %s87 = sand.u32 %s23, 1
          %s88 = scalar_lea.sflag [#allocation3], %s87
          %s89 = sand.u32 %s23, 1
          %s90 = smul.addr %s89, 8
          %s91 = scalar_lea.vmem [#allocation2], %s90
          %s93 = ssub.s32 128, 128
          %94 = vsyncadd %s88, %s93
          %s95 = smul.addr %s13, 128
          %s96 = scalar_lea.hbm %s0, %s95
          %s98 = sshll.u32 %s91, 4
          %s99 = int_to_ptr.vmem [resolvable:$true] %s98
          %101 = dma.hbm_to_vmem [thread:$0]  %s96, 128, %s99, %s88
        $region20: #{tpu_custom_call.1} parent=15 // pred_fallthru
          _
      $region16: #{tpu_custom_call.1} parent=5 // pred_fallthru
        _
      %p102 = scmp.le.s32.totalorder 1, %s13
      %p103 = scmp.lt.s32.totalorder %s13, 3
      %p104 = pnand %p102, %p103
      %p105 = pneg %p104
      // Predicated region
      $region21: #{tpu_custom_call.1} parent=5 // pred_check
        _
      $region22: #{tpu_custom_call.1} parent=5 // pred_check_branch
        %107 = sbr.rel (%p104) target = $region24
      $region23: #{tpu_custom_call.1} parent=5 // pred_region
        %s108 = ssub.s32 %s13, 1
        %s109 = sand.u32 %s26, 1
        %s110 = scalar_lea.sflag [#allocation3], %s109
        %s111 = sand.u32 %s26, 1
        %s112 = smul.addr %s111, 8
        %s113 = scalar_lea.vmem [#allocation2], %s112
        // Predicated region
        $region25: #{tpu_custom_call.1} parent=23 // pred_check
          %p114 = pneg %p39
        $region26: #{tpu_custom_call.1} parent=23 // pred_check_branch
          %116 = sbr.rel (%p114) target = $region28
        $region27: #{tpu_custom_call.1} parent=23 // pred_region
          %117 = dma.done %s110, 128
        $region28: #{tpu_custom_call.1} parent=23 // pred_fallthru
          _
        %s118 = sand.u32 %s26, 1
        %s119 = scalar_lea.sflag [#allocation3], %s118
        %s120 = sand.u32 %s26, 1
        %s121 = smul.addr %s120, 8
        %s122 = scalar_lea.vmem [#allocation2], %s121
        %p123 = pneg %p39
        %p124 = pneg %p36
        %p125 = pneg %p65
        %p126 = pneg %p62
        %s127 = sand.u32 %s52, 1
        %s128 = scalar_lea.sflag [#allocation4], %s127
        %s129 = sand.u32 %s52, 1
        %s130 = smul.addr %s129, 8
        %s131 = scalar_lea.vmem [#allocation5], %s130
        %v132 = vld [vmem:[%s113] sm:$0xff]
        %v133 = vadd.f32 %v132, 3.0
        %v134 = vmax.f32 %v133, 0.0
        %v135 = vmin.f32 %v134, 6.0
        %v136 = vmul.f32 %v135, 0.16666667
        %137 = vst [vmem:[%s131] sm:$0xff] %v136
        %s138 = sand.u32 %s52, 1
        %s139 = scalar_lea.sflag [#allocation4], %s138
        %s140 = sand.u32 %s52, 1
        %s141 = smul.addr %s140, 8
        %s142 = scalar_lea.vmem [#allocation5], %s141
        // Predicated region
        $region29: #{tpu_custom_call.1} parent=23 // pred_check
          %p143 = pneg %p62
        $region30: #{tpu_custom_call.1} parent=23 // pred_check_branch
          %145 = sbr.rel (%p143) target = $region32
        $region31: #{tpu_custom_call.1} parent=23 // pred_region
          %s147 = ssub.s32 128, 128
          %148 = vsyncadd %s139, %s147
          %s149 = smul.addr %s18, 128
          %s150 = scalar_lea.hbm %s1, %s149
          %s152 = sshll.u32 %s142, 4
          %s153 = int_to_ptr.vmem [resolvable:$true] %s152
          %155 = dma.vmem_to_hbm [thread:$0]  %s153, 128, %s150, %s139
        $region32: #{tpu_custom_call.1} parent=23 // pred_fallthru
          _
      $region24: #{tpu_custom_call.1} parent=5 // pred_fallthru
        _
      %p156 = scmp.le.s32.totalorder 2, %s13
      // Predicated region
      $region33: #{tpu_custom_call.1} parent=5 // pred_check
        %p157 = pneg %p156
      $region34: #{tpu_custom_call.1} parent=5 // pred_check_branch
        %159 = sbr.rel (%p157) target = $region36
      $region35: #{tpu_custom_call.1} parent=5 // pred_region
        %s160 = ssub.s32 %s13, 2
        // Predicated region
        $region37: #{tpu_custom_call.1} parent=35 // pred_check
          %p161 = pneg %p68
        $region38: #{tpu_custom_call.1} parent=35 // pred_check_branch
          %163 = sbr.rel (%p161) target = $region40
        $region39: #{tpu_custom_call.1} parent=35 // pred_region
          %s164 = sand.u32 %s53, 1
          %s165 = scalar_lea.sflag [#allocation4], %s164
          %s166 = sand.u32 %s53, 1
          %s167 = smul.addr %s166, 8
          %s168 = scalar_lea.vmem [#allocation5], %s167
          %169 = dma.done %s165, 128
        $region40: #{tpu_custom_call.1} parent=35 // pred_fallthru
          _
      $region36: #{tpu_custom_call.1} parent=5 // pred_fallthru
        _
    $region6: #{tpu_custom_call.1} parent=1 // loop_footer
      %s17 = sadd.s32 1, %s13
    $region7: #{tpu_custom_call.1} parent=1 // loop_footer_branch
      %12 = sbr.rel target = $region3
    $region8: #{tpu_custom_call.1} parent=1 // loop_exit
      _
    %170 = vsyncpa [#allocation3], 1
    %s171 = scalar_lea.sflag [#allocation3], 1
    %172 = vsyncpa %s171, 1
    %173 = vsyncpa [#allocation4], 1
    %s174 = scalar_lea.sflag [#allocation4], 1
    %175 = vsyncpa %s174, 1

</llo_original>
